<compile_context>
chip_gen: v6e
topology: v6e:2x2x1
jax: 0.10.0
libtpu: 0.0.40
codegen_flags: <defaults>
</compile_context>

<pallas_src>
import functools

import jax
import jax.numpy as jnp
from jax.experimental import pallas as pl
from jax.experimental.pallas import tpu as pltpu

_LANES = 128
_MAX_BLOCK_ROWS = 4096   # 4096*128*4B = 2 MiB per f32 block
_EPS = 1e-7


def _focal_elementwise(x, t, gamma, alpha):
    """Per-element focal loss in f32 (matches the PyTorch forward exactly)."""
    p = jnp.clip(x, _EPS, 1.0 - _EPS)
    bce = -(t * jnp.log(p) + (1.0 - t) * jnp.log(1.0 - p))
    d = jnp.abs(t - p)
    mod = d * d if float(gamma) == 2.0 else jnp.power(d, gamma)
    if alpha is None:
        return mod * bce
    w = alpha * t + (1.0 - alpha) * (1.0 - t)
    return w * mod * bce


def _masked_block_loss(block_id, n_valid, x_ref, t_ref, gamma, alpha):
    """Compute the focal loss for one (rows, 128) block, zeroing padded / out-of-range
    positions (positions with flat index >= n_valid)."""
    x = x_ref[...].astype(jnp.float32)
    t = t_ref[...].astype(jnp.float32)
    loss = _focal_elementwise(x, t, gamma, alpha)
    rows, lanes = loss.shape
    row_ids = jax.lax.broadcasted_iota(jnp.int32, (rows, lanes), 0)
    lane_ids = jax.lax.broadcasted_iota(jnp.int32, (rows, lanes), 1)
    flat_idx = (block_id * rows + row_ids) * lanes + lane_ids
    return jnp.where(flat_idx < n_valid, loss, 0.0)


def _focal_sum_kernel(n_ref, x_ref, t_ref, out_ref, acc_ref, *, gamma, alpha):
    """Accumulate the per-shard sum of the focal loss.

    Grid = (shards, steps): outer axis is the megacore shard ("parallel"),
    inner axis is the sequential reduction over row blocks ("arbitrary").
    """
    s = pl.program_id(0)
    j = pl.program_id(1)
    steps = pl.num_programs(1)

    @pl.when(j == 0)
    def _():
        acc_ref[...] = jnp.zeros_like(acc_ref)

    # Logical row-block id.  The index_map clamps overflow blocks (when the number
    # of blocks is not divisible by the shard count) to a valid block; the mask
    # below (flat_idx >= n) zeroes their contribution.
    block_id = s * steps + j
    acc_ref[...] += _masked_block_loss(block_id, n_ref[0], x_ref, t_ref, gamma, alpha)

    @pl.when(j == steps - 1)
    def _():
        # Single XLU reduce per shard, only at the end.  Output block is an
        # (8,128)-aligned slab; the wrapper reads element [0, 0].
        total = jnp.sum(acc_ref[...])
        out_ref[...] = jnp.broadcast_to(total, out_ref.shape)


def _focal_none_kernel(n_ref, x_ref, t_ref, out_ref, *, gamma, alpha):
    """Elementwise (no-reduction) focal loss, one row block per grid step."""
    block_id = pl.program_id(0)
    out_ref[...] = _masked_block_loss(block_id, n_ref[0], x_ref, t_ref, gamma, alpha)


def focal_loss_sigmoid(inputs, targets, gamma=2, alpha=0.55, reduction="mean"):
    """Pallas TPU implementation of FocalLossForSigmoid.forward.

    `inputs` are probabilities (the PyTorch module clamps them and feeds nn.BCELoss).
    Returns an f32 scalar for reduction in {'mean', 'sum'}; otherwise the
    per-element loss with the input's shape (matching the module's `else: pass`).
    """
    if alpha is not None:
        assert 0.0 <= alpha <= 1.0, "The value of alpha must be in [0,1]"
    gamma = float(gamma)
    alpha = None if alpha is None else float(alpha)

    orig_shape = inputs.shape
    x = jnp.reshape(inputs, (-1,))
    t = jnp.reshape(targets, (-1,))
    if t.dtype == jnp.bool_:
        t = t.astype(x.dtype)
    n = x.shape[0]

    # Reshape to (rows, 128); pad (a copy) only when numel is not a multiple of 128.
    rows_total = pl.cdiv(n, _LANES)
    n_pad = rows_total * _LANES
    if n_pad != n:
        x = jnp.pad(x, (0, n_pad - n))
        t = jnp.pad(t, (0, n_pad - n))
    x2 = x.reshape(rows_total, _LANES)
    t2 = t.reshape(rows_total, _LANES)

    if rows_total <= _MAX_BLOCK_ROWS:
        block_rows = rows_total            # whole-array block (always a legal block)
        num_blocks = 1
    else:
        block_rows = _MAX_BLOCK_ROWS       # multiple of 8 (and 16/32 for narrow dtypes)
        num_blocks = pl.cdiv(rows_total, block_rows)

    count = jnp.array([n], dtype=jnp.int32)   # scalar-prefetched valid element count

    if reduction not in ("mean", "sum"):
        # No reduction: write the per-element loss and reshape back.
        kernel = functools.partial(_focal_none_kernel, gamma=gamma, alpha=alpha)
        out = pl.pallas_call(
            kernel,
            out_shape=jax.ShapeDtypeStruct((rows_total, _LANES), jnp.float32),
            grid_spec=pltpu.PrefetchScalarGridSpec(
                num_scalar_prefetch=1,
                grid=(num_blocks,),
                in_specs=[
                    pl.BlockSpec((block_rows, _LANES), lambda i, nref: (i, 0)),
                    pl.BlockSpec((block_rows, _LANES), lambda i, nref: (i, 0)),
                ],
                out_specs=pl.BlockSpec((block_rows, _LANES), lambda i, nref: (i, 0)),
            ),
            compiler_params=pltpu.CompilerParams(
                dimension_semantics=("parallel",)),
        )(count, x2, t2)
        return out.reshape(-1)[:n].reshape(orig_shape)

    # 'mean' / 'sum': sharded partial-sum reduction.
    shards = 2 if num_blocks >= 2 else 1
    steps = pl.cdiv(num_blocks, shards)
    last_block = num_blocks - 1
    if shards * steps == num_blocks:
        def in_map(s, j, nref):
            return (s * steps + j, 0)
    else:
        # Clamp overflow grid points to a valid block; their contribution is masked.
        def in_map(s, j, nref):
            return (jnp.minimum(s * steps + j, last_block), 0)

    kernel = functools.partial(_focal_sum_kernel, gamma=gamma, alpha=alpha)
    partials = pl.pallas_call(
        kernel,
        out_shape=jax.ShapeDtypeStruct((shards, 8, _LANES), jnp.float32),
        grid_spec=pltpu.PrefetchScalarGridSpec(
            num_scalar_prefetch=1,
            grid=(shards, steps),
            in_specs=[
                pl.BlockSpec((block_rows, _LANES), in_map),
                pl.BlockSpec((block_rows, _LANES), in_map),
            ],
            out_specs=pl.BlockSpec((1, 8, _LANES), lambda s, j, nref: (s, 0, 0)),
            scratch_shapes=[pltpu.VMEM((block_rows, _LANES), jnp.float32)],
        ),
        compiler_params=pltpu.CompilerParams(
            dimension_semantics=("parallel", "arbitrary")),
    )(count, x2, t2)

    total = jnp.sum(partials[:, 0, 0])
    if reduction == "mean":
        return total / jnp.float32(n)
    return total


def _focal_ref(inputs, targets, gamma=2, alpha=0.55, reduction="mean"):
    """Pure-JAX reference (mirrors the PyTorch forward)."""
    p = jnp.clip(inputs.astype(jnp.float32), _EPS, 1.0 - _EPS)
    t = targets.astype(jnp.float32)
    bce = -(t * jnp.log(p) + (1.0 - t) * jnp.log(1.0 - p))
    mod = jnp.power(jnp.abs(t - p), float(gamma))
    if alpha is not None:
        loss = (alpha * t + (1.0 - t) * (1.0 - alpha)) * mod * bce
    else:
        loss = mod * bce
    if reduction == "mean":
        return jnp.mean(loss)
    if reduction == "sum":
        return jnp.sum(loss)
    return loss


if __name__ == "__main__":
    key = jax.random.PRNGKey(0)
    k1, k2 = jax.random.split(key)
    shape = (2, 4, 16, 16)   # NCHW: batch=2, channels=4, spatial=16x16
    # Inputs are probabilities (the torch module clamps them and uses nn.BCELoss).
    inputs = jax.random.uniform(k1, shape, dtype=jnp.float32)
    targets = (jax.random.uniform(k2, shape) > 0.5).astype(jnp.float32)

    out_mean = jax.block_until_ready(focal_loss_sigmoid(inputs, targets))
    ref_mean = jax.block_until_ready(_focal_ref(inputs, targets))
    assert jnp.allclose(out_mean, ref_mean, atol=1e-6, rtol=1e-5), (out_mean, ref_mean)

    out_sum = jax.block_until_ready(focal_loss_sigmoid(inputs, targets, reduction="sum"))
    ref_sum = jax.block_until_ready(_focal_ref(inputs, targets, reduction="sum"))
    assert jnp.allclose(out_sum, ref_sum, atol=1e-5, rtol=1e-5), (out_sum, ref_sum)

    out_none = jax.block_until_ready(focal_loss_sigmoid(inputs, targets, reduction="none"))
    ref_none = jax.block_until_ready(_focal_ref(inputs, targets, reduction="none"))
    assert jnp.allclose(out_none, ref_none, atol=1e-6, rtol=1e-5), "reduction='none' mismatch"

    print("KERNEL_OK")
</pallas_src>

<mosaic_0001>
module attributes {stable_mosaic.version = 11 : i64} {
  func.func @_focal_sum_kernel(%arg0: i32, %arg1: i32, %arg2: memref<1xi32, #tpu.memory_space<smem>>, %arg3: memref<16x128xf32, #tpu.memory_space<vmem>>, %arg4: memref<16x128xf32, #tpu.memory_space<vmem>>, %arg5: memref<1x8x128xf32, #tpu.memory_space<vmem>>, %arg6: memref<16x128xf32, #tpu.memory_space<vmem>>) attributes {dimension_semantics = [#tpu.dimension_semantics<parallel>, #tpu.dimension_semantics<arbitrary>], iteration_bounds = array<i64: 1, 1>, scalar_prefetch = 1 : i64, scratch_operands = 1 : i64, tpu.core_type = #tpu.core_type<tc>, window_params = [{transform_indices = @transform_0, window_bounds = array<i64: 16, 128>}, {transform_indices = @transform_1, window_bounds = array<i64: 16, 128>}, {transform_indices = @transform_2, window_bounds = array<i64: 1, 8, 128>}]} {
    %c0_i32 = arith.constant 0 : i32
    %0 = arith.cmpi eq, %arg1, %c0_i32 : i32
    %1 = arith.extui %0 : i1 to i32
    %c0_i32_0 = arith.constant 0 : i32
    %2 = arith.cmpi ne, %1, %c0_i32_0 : i32
    scf.if %2 {
      %cst_19 = arith.constant 0.000000e+00 : f32
      %53 = vector.broadcast %cst_19 : f32 to vector<16x128xf32>
      %c0_20 = arith.constant 0 : index
      %c0_21 = arith.constant 0 : index
      %54 = vector.load %arg6[%c0_20, %c0_21] : memref<16x128xf32, #tpu.memory_space<vmem>>, vector<16x128xf32>
      tpu.vector_store %arg6[%c0_20, %c0_21], %53 {strides = array<i32>} : memref<16x128xf32, #tpu.memory_space<vmem>>, vector<16x128xf32>,
    } else {
    }
    %c1_i32 = arith.constant 1 : i32
    %3 = arith.muli %arg0, %c1_i32 : i32
    %4 = arith.addi %3, %arg1 : i32
    %c0 = arith.constant 0 : index
    %c0_1 = arith.constant 0 : index
    %5 = vector.load %arg6[%c0, %c0_1] : memref<16x128xf32, #tpu.memory_space<vmem>>, vector<16x128xf32>
    %c0_2 = arith.constant 0 : index
    %6 = memref.load %arg2[%c0_2] : memref<1xi32, #tpu.memory_space<smem>>
    %c0_3 = arith.constant 0 : index
    %c0_4 = arith.constant 0 : index
    %7 = vector.load %arg3[%c0_3, %c0_4] : memref<16x128xf32, #tpu.memory_space<vmem>>, vector<16x128xf32>
    %c0_5 = arith.constant 0 : index
    %c0_6 = arith.constant 0 : index
    %8 = vector.load %arg4[%c0_5, %c0_6] : memref<16x128xf32, #tpu.memory_space<vmem>>, vector<16x128xf32>
    %cst = arith.constant 1.000000e-07 : f32
    %cst_7 = arith.constant 0.99999988 : f32
    %9 = vector.broadcast %cst : f32 to vector<16x128xf32>
    %10 = arith.maximumf %9, %7 : vector<16x128xf32>
    %11 = vector.broadcast %cst_7 : f32 to vector<16x128xf32>
    %12 = arith.minimumf %11, %10 : vector<16x128xf32>
    %13 = math.log %12 : vector<16x128xf32>
    %14 = arith.mulf %8, %13 : vector<16x128xf32>
    %cst_8 = arith.constant 1.000000e+00 : f32
    %15 = vector.broadcast %cst_8 : f32 to vector<16x128xf32>
    %16 = arith.subf %15, %8 : vector<16x128xf32>
    %cst_9 = arith.constant 1.000000e+00 : f32
    %17 = vector.broadcast %cst_9 : f32 to vector<16x128xf32>
    %18 = arith.subf %17, %12 : vector<16x128xf32>
    %19 = math.log %18 : vector<16x128xf32>
    %20 = arith.mulf %16, %19 : vector<16x128xf32>
    %21 = arith.addf %14, %20 : vector<16x128xf32>
    %cst_10 = arith.constant 0.000000e+00 : f32
    %22 = vector.broadcast %cst_10 : f32 to vector<16x128xf32>
    %23 = arith.subf %22, %21 : vector<16x128xf32>
    %24 = arith.subf %8, %12 : vector<16x128xf32>
    %25 = math.absf %24 : vector<16x128xf32>
    %26 = arith.mulf %25, %25 : vector<16x128xf32>
    %cst_11 = arith.constant 5.500000e-01 : f32
    %27 = vector.broadcast %cst_11 : f32 to vector<16x128xf32>
    %28 = arith.mulf %27, %8 : vector<16x128xf32>
    %cst_12 = arith.constant 1.000000e+00 : f32
    %29 = vector.broadcast %cst_12 : f32 to vector<16x128xf32>
    %30 = arith.subf %29, %8 : vector<16x128xf32>
    %cst_13 = arith.constant 4.500000e-01 : f32
    %31 = vector.broadcast %cst_13 : f32 to vector<16x128xf32>
    %32 = arith.mulf %31, %30 : vector<16x128xf32>
    %33 = arith.addf %28, %32 : vector<16x128xf32>
    %34 = arith.mulf %33, %26 : vector<16x128xf32>
    %35 = arith.mulf %34, %23 : vector<16x128xf32>
    %36 = tpu.iota {dimensions = array<i32: 0>} : vector<16x128xi32>
    %37 = tpu.iota {dimensions = array<i32: 1>} : vector<16x128xi32>
    %c16_i32 = arith.constant 16 : i32
    %38 = arith.muli %4, %c16_i32 : i32
    %39 = vector.broadcast %38 : i32 to vector<16x128xi32>
    %40 = arith.addi %39, %36 : vector<16x128xi32>
    %c128_i32 = arith.constant 128 : i32
    %41 = vector.broadcast %c128_i32 : i32 to vector<16x128xi32>
    %42 = arith.muli %40, %41 : vector<16x128xi32>
    %43 = arith.addi %42, %37 : vector<16x128xi32>
    %44 = vector.broadcast %6 : i32 to vector<16x128xi32>
    %45 = arith.cmpi slt, %43, %44 : vector<16x128xi32>
    %cst_14 = arith.constant 0.000000e+00 : f32
    %46 = vector.broadcast %cst_14 : f32 to vector<16x128xf32>
    %47 = arith.select %45, %35, %46 : vector<16x128xi1>, vector<16x128xf32>
    %48 = arith.addf %5, %47 : vector<16x128xf32>
    %c0_15 = arith.constant 0 : index
    %c0_16 = arith.constant 0 : index
    %49 = vector.load %arg6[%c0_15, %c0_16] : memref<16x128xf32, #tpu.memory_space<vmem>>, vector<16x128xf32>
    tpu.vector_store %arg6[%c0_15, %c0_16], %48 {strides = array<i32>} : memref<16x128xf32, #tpu.memory_space<vmem>>, vector<16x128xf32>,
    %c0_i32_17 = arith.constant 0 : i32
    %50 = arith.cmpi eq, %arg1, %c0_i32_17 : i32
    %51 = arith.extui %50 : i1 to i32
    %c0_i32_18 = arith.constant 0 : i32
    %52 = arith.cmpi ne, %51, %c0_i32_18 : i32
    scf.if %52 {
      %c0_19 = arith.constant 0 : index
      %c0_20 = arith.constant 0 : index
      %53 = vector.load %arg6[%c0_19, %c0_20] : memref<16x128xf32, #tpu.memory_space<vmem>>, vector<16x128xf32>
      %54 = vector.shape_cast %53 : vector<16x128xf32> to vector<1x16x128xf32>
      %cst_21 = arith.constant dense<0.000000e+00> : vector<1xf32>
      %55 = vector.multi_reduction <add>, %54, %cst_21 [1, 2] : vector<1x16x128xf32> to vector<1xf32>
      %56 = vector.shape_cast %55 : vector<1xf32> to vector<1x1x1xf32>
      %57 = vector.extract %56[0, 0, 0] : f32 from vector<1x1x1xf32>
      %58 = vector.broadcast %57 : f32 to vector<1x8x128xf32>
      %c0_22 = arith.constant 0 : index
      %c0_23 = arith.constant 0 : index
      %c0_24 = arith.constant 0 : index
      %59 = vector.load %arg5[%c0_22, %c0_23, %c0_24] : memref<1x8x128xf32, #tpu.memory_space<vmem>>, vector<1x8x128xf32>
      tpu.vector_store %arg5[%c0_22, %c0_23, %c0_24], %58 {strides = array<i32>} : memref<1x8x128xf32, #tpu.memory_space<vmem>>, vector<1x8x128xf32>,
    } else {
    }
    return
  }
  func.func @transform_0(%arg0: i32, %arg1: i32, %arg2: memref<1xi32, #tpu.memory_space<smem>>) -> (i32, i32) {
    %c1_i32 = arith.constant 1 : i32
    %0 = arith.muli %arg0, %c1_i32 : i32
    %1 = arith.addi %0, %arg1 : i32
    %c0_i32 = arith.constant 0 : i32
    %c0_i32_0 = arith.constant 0 : i32
    return %1, %c0_i32 : i32, i32
  }
  func.func @transform_1(%arg0: i32, %arg1: i32, %arg2: memref<1xi32, #tpu.memory_space<smem>>) -> (i32, i32) {
    %c1_i32 = arith.constant 1 : i32
    %0 = arith.muli %arg0, %c1_i32 : i32
    %1 = arith.addi %0, %arg1 : i32
    %c0_i32 = arith.constant 0 : i32
    %c0_i32_0 = arith.constant 0 : i32
    return %1, %c0_i32 : i32, i32
  }
  func.func @transform_2(%arg0: i32, %arg1: i32, %arg2: memref<1xi32, #tpu.memory_space<smem>>) -> (i32, i32, i32) {
    %c0_i32 = arith.constant 0 : i32
    %c0_i32_0 = arith.constant 0 : i32
    %c0_i32_1 = arith.constant 0 : i32
    return %arg0, %c0_i32, %c0_i32_0 : i32, i32, i32
  }
}

</mosaic_0001>

<llo_original>
// kernel: tpu_custom_call.1
$region0: #{tpu_custom_call.1}
  #allocation0 [shape = 'u32[]', space=smem, size = 0x4, offset = 0x4, fixed_abs, tag = 'smem constant byte address 0x4 - core index']
  #allocation1 [shape = 'u32[144,128]{1,0:T(1,128)}', space=vmem, size = 0x12000, scoped, tag = 'internal scratch']
  #allocation2 [shape = 'f32[16,128]{1,0:T(8,128)}', space=vmem, size = 0x2000, scoped, tag = 'scratch operand']
  #allocation3 [shape = 's32[1]{0}', space=sflag, size = 0x4, scoped, tag = 'scoped memory for tpu_custom_call.1']
  #allocation4 [shape = 's32[1]{0:T(128)S(6)}', space=smem, size = 0x200, scoped, tag = 'prefetched SMEM operand 0']
  %s0 = inlined_call_operand.<no memory space> [shape: s32[1], index: 0, kind: input, shape index: {}]
  %s1 = inlined_call_operand.hbm [shape: f32[16,128], index: 1, kind: input, shape index: {}]
  %s2 = inlined_call_operand.hbm [shape: f32[16,128], index: 2, kind: input, shape index: {}]
  %s3 = inlined_call_operand.hbm [shape: f32[1,8,128], index: 3, kind: output, shape index: {}]
  %s4 = sld [smem:[#allocation0]]
  $region34: #{tpu_custom_call.1} parent=0
    _
  %s6 = ssub.s32 1, %s4
  %s7 = scalar_select 0, %s6, %s4
  %8 = sst [smem:[#allocation4]] %s0
  $region1: #{tpu_custom_call.1} parent=0
    #allocation5 [shape = 'u8[8192]{0}', space=vmem, size = 0x2000, scoped, tag = 'input window, operand 1, single buffered']
    #allocation6 [shape = 's32[1]{0}', space=sflag, size = 0x4, scoped, tag = 'scoped memory for tpu_custom_call.1']
    #allocation7 [shape = 's32[1]{0}', space=sflag, size = 0x4, scoped, tag = 'scoped memory for tpu_custom_call.1']
    #allocation8 [shape = 'u8[8192]{0}', space=vmem, size = 0x2000, scoped, tag = 'input window, operand 2, single buffered']
    #allocation9 [shape = 's32[1]{0}', space=sflag, size = 0x4, scoped, tag = 'scoped memory for tpu_custom_call.1']
    #allocation10 [shape = 'u8[4096]{0}', space=vmem, size = 0x1000, scoped, tag = 'output window, operand 0, single buffered']
    %9 = vsyncpa [#allocation6], 0
    %10 = vsyncpa [#allocation9], 0
    %11 = vsyncpa [#allocation7], 0
    // Predicated region
    $region2: #{tpu_custom_call.1} parent=1 // pred_check
      _
    $region3: #{tpu_custom_call.1} parent=1 // pred_check_branch
      %13 = sbr.rel (0) target = $region5
    $region4: #{tpu_custom_call.1} parent=1 // pred_region
      %s14 = sadd.s32 0, 0
      %s15 = smul.u32 2, %s14
      %s17 = ssub.s32 256, 256
      %18 = vsyncadd [#allocation6], %s17
      %s19 = smul.addr %s15, 128
      %s20 = scalar_lea.hbm %s1, %s19
      %s21 = sshll.u32 [#allocation5], 4
      %s22 = int_to_ptr.vmem [resolvable:$true] %s21
      %27 = dma.hbm_to_vmem [thread:$0]  %s20, 256, %s22, [#allocation6], 128, 128, 8
    $region5: #{tpu_custom_call.1} parent=1 // pred_fallthru
      _
    // Predicated region
    $region6: #{tpu_custom_call.1} parent=1 // pred_check
      _
    $region7: #{tpu_custom_call.1} parent=1 // pred_check_branch
      %29 = sbr.rel (0) target = $region9
    $region8: #{tpu_custom_call.1} parent=1 // pred_region
      %s30 = sadd.s32 0, 0
      %s31 = smul.u32 2, %s30
      %s33 = ssub.s32 256, 256
      %34 = vsyncadd [#allocation9], %s33
      %s35 = smul.addr %s31, 128
      %s36 = scalar_lea.hbm %s2, %s35
      %s37 = sshll.u32 [#allocation8], 4
      %s38 = int_to_ptr.vmem [resolvable:$true] %s37
      %43 = dma.hbm_to_vmem [thread:$0]  %s36, 256, %s38, [#allocation9], 128, 128, 8
    $region9: #{tpu_custom_call.1} parent=1 // pred_fallthru
      _
    // Predicated region
    $region10: #{tpu_custom_call.1} parent=1 // pred_check
      _
    $region11: #{tpu_custom_call.1} parent=1 // pred_check_branch
      %45 = sbr.rel (0) target = $region13
    $region12: #{tpu_custom_call.1} parent=1 // pred_region
      %46 = dma.done [#allocation6], 256
    $region13: #{tpu_custom_call.1} parent=1 // pred_fallthru
      _
    // Predicated region
    $region14: #{tpu_custom_call.1} parent=1 // pred_check
      _
    $region15: #{tpu_custom_call.1} parent=1 // pred_check_branch
      %48 = sbr.rel (0) target = $region17
    $region16: #{tpu_custom_call.1} parent=1 // pred_region
      %49 = dma.done [#allocation9], 256
    $region17: #{tpu_custom_call.1} parent=1 // pred_fallthru
      _
    %s50 = sadd.s32 0, 0
    %s51 = smul.u32 2, %s50
    %s52 = sadd.s32 0, 0
    %s53 = smul.u32 2, %s52
    %p54 = scmp.eq.s32.totalorder 0, 0
    // Predicated region
    $region18: #{tpu_custom_call.1} parent=1 // pred_check
      %p55 = pneg %p54
    $region19: #{tpu_custom_call.1} parent=1 // pred_check_branch
      %57 = sbr.rel (%p55) target = $region21
    $region20: #{tpu_custom_call.1} parent=1 // pred_region
      %58 = vst [vmem:[#allocation2] sm:$0xff] 0.0
      %59 = vst [vmem:[#allocation2 + $0x8] sm:$0xff] 0.0
    $region21: #{tpu_custom_call.1} parent=1 // pred_fallthru
      _
    %s60 = sadd.s32 0, 0
    %v61 = vld [vmem:[#allocation2] sm:$0xff]
    %v62 = vld [vmem:[#allocation2 + $0x8] sm:$0xff]
    %s63 = sld [smem:[#allocation4]]
    %v64 = vld [vmem:[#allocation5] sm:$0xff]
    %v65 = vld [vmem:[#allocation5 + $0x8] sm:$0xff]
    %v66 = vld [vmem:[#allocation8] sm:$0xff]
    %v67 = vld [vmem:[#allocation8 + $0x8] sm:$0xff]
    %v68 = vmax.f32 %v64, 1e-07
    %v69 = vmax.f32 %v65, 1e-07
    %v70 = vmin.f32 %v68, 0.9999999
    %v71 = vmin.f32 %v69, 0.9999999
    %v72 = vlog2.pop %v70
    %v73 = vmul.f32 %v72, 0.6931472
    %v74 = vlog2.pop %v71
    %v75 = vmul.f32 %v74, 0.6931472
    %v76 = vmul.f32 %v66, %v73
    %v77 = vmul.f32 %v67, %v75
    %v78 = vsub.f32 1.0, %v66
    %v79 = vsub.f32 1.0, %v67
    %v80 = vsub.f32 1.0, %v70
    %v81 = vsub.f32 1.0, %v71
    %v82 = vlog2.pop %v80
    %v83 = vmul.f32 %v82, 0.6931472
    %v84 = vlog2.pop %v81
    %v85 = vmul.f32 %v84, 0.6931472
    %v86 = vmul.f32 %v78, %v83
    %v87 = vmul.f32 %v79, %v85
    %v88 = vadd.f32 %v76, %v86
    %v89 = vadd.f32 %v77, %v87
    %v90 = vsub.f32 0.0, %v88
    %v91 = vsub.f32 0.0, %v89
    %v92 = vsub.f32 %v66, %v70
    %v93 = vsub.f32 %v67, %v71
    %v94 = vand.u32 2147483647, %v92
    %v95 = vand.u32 2147483647, %v93
    %v96 = vmul.f32 %v94, %v94
    %v97 = vmul.f32 %v95, %v95
    %v98 = vmul.f32 %v66, 0.55
    %v99 = vmul.f32 %v67, 0.55
    %v100 = vmul.f32 %v78, 0.45
    %v101 = vmul.f32 %v79, 0.45
    %v102 = vadd.f32 %v98, %v100
    %v103 = vadd.f32 %v99, %v101
    %v104 = vmul.f32 %v102, %v96
    %v105 = vmul.f32 %v103, %v97
    %v106 = vmul.f32 %v104, %v90
    %v107 = vmul.f32 %v105, %v91
    %v108 = vlaneseq
    %v109 = vshrl.u32 %v108, 7
    %v110 = vadd.s32 %v109, 8
    %v111 = vlaneseq
    %v112 = vand.u32 %v111, 127
    %s113 = smul.u32 %s60, 16
    %v114 = vstv %s113
    %v115 = vadd.s32 %v114, %v109
    %v116 = vadd.s32 %v114, %v110
    %v117 = vmul.u32 %v115, 128
    %v118 = vmul.u32 %v116, 128
    %v119 = vadd.s32 %v117, %v112
    %v120 = vadd.s32 %v118, %v112
    %v121 = vstv %s63
    %vm122 = vcmp.lt.s32.totalorder %v119, %v121
    %vm123 = vcmp.lt.s32.totalorder %v120, %v121
    %v124 = vsel %vm122, %v106, 0.0
    %v125 = vsel %vm123, %v107, 0.0
    %v126 = vadd.f32 %v61, %v124
    %v127 = vadd.f32 %v62, %v125
    %128 = vst [vmem:[#allocation2] sm:$0xff] %v126
    %129 = vst [vmem:[#allocation2 + $0x8] sm:$0xff] %v127
    // Predicated region
    $region22: #{tpu_custom_call.1} parent=1 // pred_check
      %p130 = pneg %p54
    $region23: #{tpu_custom_call.1} parent=1 // pred_check_branch
      %132 = sbr.rel (%p130) target = $region25
    $region24: #{tpu_custom_call.1} parent=1 // pred_region
      %v133 = vld [vmem:[#allocation2] sm:$0xff]
      %v134 = vld [vmem:[#allocation2 + $0x8] sm:$0xff]
      %v135 = vadd.f32 %v133, %v134
      %136 = vadd.xlane.f32.xlu0 %v135
      %v137 = vpop.xlane.xlu0 %136
      %v138 = vrot.slane %v137, 4
      %v139 = vadd.f32 %v137, %v138
      %v140 = vrot.slane %v139, 2
      %v141 = vadd.f32 %v139, %v140
      %v142 = vrot.slane %v141, 1
      %v143 = vadd.f32 %v141, %v142
      %s144 = vtos %v143
      %v145 = vstv %s144
      %146 = vst [vmem:[#allocation10] sm:$0xff] %v145
    $region25: #{tpu_custom_call.1} parent=1 // pred_fallthru
      _
    // Predicated region
    $region26: #{tpu_custom_call.1} parent=1 // pred_check
      _
    $region27: #{tpu_custom_call.1} parent=1 // pred_check_branch
      %148 = sbr.rel (0) target = $region29
    $region28: #{tpu_custom_call.1} parent=1 // pred_region
      %s150 = ssub.s32 128, 128
      %151 = vsyncadd [#allocation7], %s150
      %s153 = sshll.u32 [#allocation10], 4
      %s154 = int_to_ptr.vmem [resolvable:$true] %s153
      %156 = dma.vmem_to_hbm [thread:$0]  %s154, 128, %s3, [#allocation7]
    $region29: #{tpu_custom_call.1} parent=1 // pred_fallthru
      _
    // Predicated region
    $region30: #{tpu_custom_call.1} parent=1 // pred_check
      _
    $region31: #{tpu_custom_call.1} parent=1 // pred_check_branch
      %158 = sbr.rel (0) target = $region33
    $region32: #{tpu_custom_call.1} parent=1 // pred_region
      %159 = dma.done [#allocation7], 128
    $region33: #{tpu_custom_call.1} parent=1 // pred_fallthru
      _
    %160 = vsyncpa [#allocation6], 1
    %161 = vsyncpa [#allocation9], 1
    %162 = vsyncpa [#allocation7], 1

</llo_original>
